<compile_context>
chip_gen: v7x
topology: tpu7x:2x2x1
jax: 0.10.0
libtpu: 0.0.40
codegen_flags: <defaults>
</compile_context>

<pallas_src>
import functools
import math

import jax
import jax.numpy as jnp
from jax.experimental import pallas as pl
from jax.experimental.pallas import tpu as pltpu


_LANE = 128       # VMEM lane width (last dim padded to this)
_SUBLANE = 8      # second-minor tiling granule


def _hw_vmem_caps():
    """Derive tile budget / scoped-VMEM limit / default block size from hardware."""
    try:
        cap = int(pltpu.get_tpu_info().vmem_capacity_bytes)
    except Exception:
        cap = 64 << 20  # conservative fallback (v7x per-TC VMEM)
    budget = min(int(cap * 0.45), 48 << 20)          # per-tile working-set budget
    budget = max(budget, 16 << 20)
    limit = min(budget + (12 << 20), cap - (8 << 20))  # raise 16/32 MiB scoped default
    limit = max(limit, budget + (4 << 20))
    # 128 MiB parts (v5e/v6e) can afford 2048-row x tiles; 64 MiB v7x stays at 1024.
    default_block_b = 2048 if cap >= (96 << 20) else 1024
    return budget, limit, default_block_b


_VMEM_BUDGET_BYTES, _VMEM_LIMIT_BYTES, _DEFAULT_BLOCK_B = _hw_vmem_caps()


def _linear_kernel(x_ref, w_ref, b_ref, o_ref):
    # x_ref: (tb, F), w_ref: (F, 10), b_ref: (1, 10) f32, o_ref: (tb, 10)
    acc = jnp.dot(x_ref[...], w_ref[...], preferred_element_type=jnp.float32)
    o_ref[...] = (acc + b_ref[...]).astype(o_ref.dtype)


def _round_up(v, m):
    return -(-v // m) * m


def _tile_vmem_bytes(tb, feat, x_itemsize, w_itemsize):
    """VMEM footprint of one candidate tiling (lane-padded to 128)."""
    x_bytes = 2 * tb * feat * x_itemsize      # double-buffered x tile
    o_bytes = 2 * tb * _LANE * 4              # double-buffered (lane-padded) out tile
    w_bytes = feat * _LANE * w_itemsize       # resident weight (single buffer)
    b_bytes = _SUBLANE * _LANE * 4            # resident bias
    return x_bytes + o_bytes + w_bytes + b_bytes


def _pick_tile(batch, feat, block_b, x_itemsize, w_itemsize):
    """Largest batch tile <= block_b that fits VMEM and leaves >= 2 grid steps."""
    tb = min(block_b, batch)
    # Guarantee at least 2 grid steps when B >= 16 so v7x's two TensorCores both
    # get work ('parallel' batch axis); near-free extra step on single-TC chips.
    if batch >= 2 * _SUBLANE:
        tb = min(tb, _round_up(pl.cdiv(batch, 2), _SUBLANE))
    if tb >= batch:
        tb = batch                             # full-dim block: no divisibility rule
    else:
        tb = max(_SUBLANE, _round_up(tb, _SUBLANE))
        if tb >= batch:
            tb = batch
    # Shrink until the working set fits the VMEM budget.
    while tb > _SUBLANE and _tile_vmem_bytes(tb, feat, x_itemsize, w_itemsize) > _VMEM_BUDGET_BYTES:
        nxt = max(_SUBLANE, (tb // 2 // _SUBLANE) * _SUBLANE)
        if nxt == tb:
            break
        tb = nxt
    return tb


@functools.partial(jax.jit, static_argnames=("block_b",))
def _linear_fwd(x, w_t, b2, block_b=_DEFAULT_BLOCK_B):
    """y = x @ w_t + b2, with w_t pre-transposed to (F, 10) and b2 shaped (1, 10) f32."""
    B, F = x.shape
    out_dim = w_t.shape[1]
    out_dtype = jnp.promote_types(x.dtype, w_t.dtype)

    x_itemsize = jnp.dtype(x.dtype).itemsize
    w_itemsize = jnp.dtype(w_t.dtype).itemsize
    out_itemsize = jnp.dtype(out_dtype).itemsize

    tb = _pick_tile(B, F, block_b, x_itemsize, w_itemsize)
    n_steps = pl.cdiv(B, tb)
    grid = (n_steps,)

    # Streamed x tile. For long grids of small tiles the fixed per-step DMA latency
    # is exposed, so request a third buffer there; otherwise default double-buffer.
    if n_steps >= 3 and tb * F * x_itemsize <= (1 << 20):
        x_spec = pl.BlockSpec((tb, F), lambda i: (i, 0), pipeline_mode=pl.Buffered(3))
    else:
        x_spec = pl.BlockSpec((tb, F), lambda i: (i, 0))

    # Grid-invariant operands: one resident VMEM buffer each (no double-buffer).
    w_spec = pl.BlockSpec((F, out_dim), lambda i: (0, 0), pipeline_mode=pl.Buffered(1))
    b_spec = pl.BlockSpec((1, out_dim), lambda i: (0, 0), pipeline_mode=pl.Buffered(1))

    cost = pl.CostEstimate(
        flops=2 * B * F * out_dim,
        transcendentals=0,
        bytes_accessed=(B * F * x_itemsize
                        + F * out_dim * w_itemsize
                        + out_dim * jnp.dtype(b2.dtype).itemsize
                        + B * out_dim * out_itemsize),
    )

    return pl.pallas_call(
        _linear_kernel,
        out_shape=jax.ShapeDtypeStruct((B, out_dim), out_dtype),
        grid_spec=pltpu.PrefetchScalarGridSpec(
            num_scalar_prefetch=0,
            grid=grid,
            in_specs=[x_spec, w_spec, b_spec],
            out_specs=pl.BlockSpec((tb, out_dim), lambda i: (i, 0)),
        ),
        compiler_params=pltpu.CompilerParams(
            dimension_semantics=("parallel",),     # megacore / v7x dual-TC split
            vmem_limit_bytes=_VMEM_LIMIT_BYTES,
        ),
        cost_estimate=cost,
    )(x, w_t, b2)


def prepare_params(weight, bias, param_dtype=None):
    """One-time param prep: PyTorch layout (10, F) -> (F, 10); bias -> (1, 10) f32.

    Pass param_dtype=jnp.bfloat16 for the reduced-precision (memory-bound ~2x) path;
    the bias stays f32 so the epilogue add happens at full precision.
    """
    w_t = jnp.asarray(weight).T                # materialized once, not per forward
    if param_dtype is not None:
        w_t = w_t.astype(param_dtype)
    b2 = jnp.asarray(bias).reshape(1, -1).astype(jnp.float32)
    return w_t, b2


def linear_forward(x, w_t, b2, block_b=_DEFAULT_BLOCK_B):
    """Forward with pre-prepared params (resident single-buffered weight/bias)."""
    return _linear_fwd(x, w_t, b2, block_b=block_b)


def label_classifier_digits(x, weight, bias, *, block_b=_DEFAULT_BLOCK_B,
                            compute_dtype=None):
    """Drop-in forward taking PyTorch nn.Linear layout params.

    compute_dtype=jnp.bfloat16 casts x and the weight (halves HBM bytes on this
    memory-bound kernel) while keeping f32 MXU accumulation; default is exact f32.
    """
    w_t, b2 = prepare_params(weight, bias, param_dtype=compute_dtype)
    if compute_dtype is not None:
        x = x.astype(compute_dtype)
    return linear_forward(x, w_t, b2, block_b=block_b)


if __name__ == "__main__":
    # Small shapes consistent with the module (nn.Linear(input_size, 10)).
    input_size = 256
    out_dim = 10

    key = jax.random.PRNGKey(0)
    kx, kw, kb, kx2 = jax.random.split(key, 4)

    # Deterministic PyTorch-nn.Linear-style uniform init.
    bound = 1.0 / math.sqrt(input_size)
    weight = jax.random.uniform(kw, (out_dim, input_size), jnp.float32, -bound, bound)
    bias = jax.random.uniform(kb, (out_dim,), jnp.float32, -bound, bound)

    # One-time (hoisted) parameter prep for the exact f32 path.
    w_t, b2 = prepare_params(weight, bias)

    # Check 1: small batch, single tile (f32).
    x = jax.random.normal(kx, (8, input_size), jnp.float32)
    y = linear_forward(x, w_t, b2)
    jax.block_until_ready(y)
    y_ref = x @ weight.T + bias
    assert y.shape == (8, out_dim)
    assert jnp.allclose(y, y_ref, atol=1e-3, rtol=1e-3)

    # Check 2: multi-step grid with a partial trailing tile (f32).
    x2 = jax.random.normal(kx2, (40, input_size), jnp.float32)
    y2 = linear_forward(x2, w_t, b2)
    jax.block_until_ready(y2)
    y2_ref = x2 @ weight.T + bias
    assert y2.shape == (40, out_dim)
    assert jnp.allclose(y2, y2_ref, atol=1e-3, rtol=1e-3)

    # Check 3: reduced-precision (bf16 stream, f32 accumulate) path.
    y3 = label_classifier_digits(x2, weight, bias, compute_dtype=jnp.bfloat16)
    jax.block_until_ready(y3)
    x2_bf = x2.astype(jnp.bfloat16).astype(jnp.float32)
    w_bf = weight.astype(jnp.bfloat16).astype(jnp.float32)
    y3_ref = x2_bf @ w_bf.T + bias
    assert y3.shape == (40, out_dim)
    assert jnp.allclose(y3.astype(jnp.float32), y3_ref, atol=2e-2, rtol=2e-2)

    print("KERNEL_OK")
</pallas_src>

<mosaic_0001>
module attributes {stable_mosaic.version = 11 : i64} {
  func.func @_linear_kernel(%arg0: i32, %arg1: memref<8x256xf32, #tpu.memory_space<vmem>>, %arg2: memref<256x10xf32, #tpu.memory_space<vmem>>, %arg3: memref<1x10xf32, #tpu.memory_space<vmem>>, %arg4: memref<8x10xf32, #tpu.memory_space<vmem>>) attributes {dimension_semantics = [#tpu.dimension_semantics<parallel>], iteration_bounds = array<i64: 1>, scalar_prefetch = 0 : i64, scratch_operands = 0 : i64, tpu.core_type = #tpu.core_type<tc>, window_params = [{transform_indices = @transform_0, window_bounds = array<i64: 8, 256>}, {pipeline_mode = #tpu.pipeline_mode<synchronous>, transform_indices = @transform_1, window_bounds = array<i64: 256, 10>}, {pipeline_mode = #tpu.pipeline_mode<synchronous>, transform_indices = @transform_2, window_bounds = array<i64: 1, 10>}, {transform_indices = @transform_3, window_bounds = array<i64: 8, 10>}]} {
    %c0 = arith.constant 0 : index
    %c0_0 = arith.constant 0 : index
    %0 = vector.load %arg1[%c0, %c0_0] : memref<8x256xf32, #tpu.memory_space<vmem>>, vector<8x256xf32>
    %c0_1 = arith.constant 0 : index
    %c0_2 = arith.constant 0 : index
    %1 = vector.load %arg2[%c0_1, %c0_2] : memref<256x10xf32, #tpu.memory_space<vmem>>, vector<256x10xf32>
    %cst = arith.constant dense<0.000000e+00> : vector<8x10xf32>
    %2 = tpu.matmul %0, %1, %cst {dimension_numbers = #tpu.dot_dimension_numbers<[1], [0], [0], [1], [0, 0, 1, 1], [], []>} : vector<8x256xf32>, vector<256x10xf32>, vector<8x10xf32> -> vector<8x10xf32>
    %c0_3 = arith.constant 0 : index
    %c0_4 = arith.constant 0 : index
    %3 = vector.load %arg3[%c0_3, %c0_4] : memref<1x10xf32, #tpu.memory_space<vmem>>, vector<1x10xf32>
    %4 = vector.broadcast %3 : vector<1x10xf32> to vector<8x10xf32>
    %5 = arith.addf %2, %4 : vector<8x10xf32>
    %c0_5 = arith.constant 0 : index
    %c0_6 = arith.constant 0 : index
    %6 = vector.load %arg4[%c0_5, %c0_6] : memref<8x10xf32, #tpu.memory_space<vmem>>, vector<8x10xf32>
    tpu.vector_store %arg4[%c0_5, %c0_6], %5 {strides = array<i32>} : memref<8x10xf32, #tpu.memory_space<vmem>>, vector<8x10xf32>,
    return
  }
  func.func @transform_0(%arg0: i32) -> (i32, i32) {
    %c0_i32 = arith.constant 0 : i32
    %c0_i32_0 = arith.constant 0 : i32
    return %arg0, %c0_i32 : i32, i32
  }
  func.func @transform_1(%arg0: i32) -> (i32, i32) {
    %c0_i32 = arith.constant 0 : i32
    %c0_i32_0 = arith.constant 0 : i32
    %c0_i32_1 = arith.constant 0 : i32
    return %c0_i32, %c0_i32_0 : i32, i32
  }
  func.func @transform_2(%arg0: i32) -> (i32, i32) {
    %c0_i32 = arith.constant 0 : i32
    %c0_i32_0 = arith.constant 0 : i32
    %c0_i32_1 = arith.constant 0 : i32
    return %c0_i32, %c0_i32_0 : i32, i32
  }
  func.func @transform_3(%arg0: i32) -> (i32, i32) {
    %c0_i32 = arith.constant 0 : i32
    %c0_i32_0 = arith.constant 0 : i32
    return %arg0, %c0_i32 : i32, i32
  }
}

</mosaic_0001>

<llo_original>
// kernel: _linear_fwd.1
$region0: #{_linear_fwd.1}
  #allocation0 [shape = 'u32[]', space=smem, size = 0x4, offset = 0x4, fixed_abs, tag = 'smem constant byte address 0x4 - core index']
  #allocation1 [shape = 'u32[144,128]{1,0:T(1,128)}', space=vmem, size = 0x12000, scoped, tag = 'internal scratch']
  %s0 = inlined_call_operand.vmem [shape: f32[8,256], index: 0, kind: input, shape index: {}]
  %s1 = inlined_call_operand.vmem [shape: f32[256,10], index: 1, kind: input, shape index: {}]
  %s2 = inlined_call_operand.vmem [shape: f32[1,10], index: 2, kind: input, shape index: {}]
  %s3 = inlined_call_operand.hbm [shape: f32[8,10], index: 3, kind: output, shape index: {}]
  %s4 = sld [smem:[#allocation0]]
  $region22: #{_linear_fwd.1} parent=0
    _
  %s6 = ssub.s32 1, %s4
  %s7 = scalar_select 0, %s6, %s4
  $region1: #{_linear_fwd.1} parent=0
    #allocation2 [shape = 'u8[4096]{0}', space=vmem, size = 0x1000, scoped, tag = 'output window, operand 0, single buffered']
    #allocation3 [shape = 's32[1]{0}', space=sflag, size = 0x4, scoped, tag = 'scoped memory for _linear_fwd.1']
    %8 = vsyncpa [#allocation3], 0
    // Predicated region
    $region2: #{_linear_fwd.1} parent=1 // pred_check
      _
    $region3: #{_linear_fwd.1} parent=1 // pred_check_branch
      %10 = sbr.rel (0) target = $region5
    $region4: #{_linear_fwd.1} parent=1 // pred_region
      _
    $region5: #{_linear_fwd.1} parent=1 // pred_fallthru
      _
    // Predicated region
    $region6: #{_linear_fwd.1} parent=1 // pred_check
      _
    $region7: #{_linear_fwd.1} parent=1 // pred_check_branch
      %12 = sbr.rel (0) target = $region9
    $region8: #{_linear_fwd.1} parent=1 // pred_region
      _
    $region9: #{_linear_fwd.1} parent=1 // pred_fallthru
      _
    // Predicated region
    $region10: #{_linear_fwd.1} parent=1 // pred_check
      _
    $region11: #{_linear_fwd.1} parent=1 // pred_check_branch
      %14 = sbr.rel (0) target = $region13
    $region12: #{_linear_fwd.1} parent=1 // pred_region
      _
    $region13: #{_linear_fwd.1} parent=1 // pred_fallthru
      _
    %v15 = vld [vmem:[%s0] sm:$0xff]
    %v16 = vld [vmem:[%s0 + $0x8] sm:$0xff]
    %v17 = vld [vmem:[%s1] sm:$0xff]
    %v18 = vld [vmem:[%s1 + $0x8] sm:$0xff]
    %v19 = vld [vmem:[%s1 + $0x10] sm:$0xff]
    %v20 = vld [vmem:[%s1 + $0x18] sm:$0xff]
    %v21 = vld [vmem:[%s1 + $0x20] sm:$0xff]
    %v22 = vld [vmem:[%s1 + $0x28] sm:$0xff]
    %v23 = vld [vmem:[%s1 + $0x30] sm:$0xff]
    %v24 = vld [vmem:[%s1 + $0x38] sm:$0xff]
    %v25 = vld [vmem:[%s1 + $0x40] sm:$0xff]
    %v26 = vld [vmem:[%s1 + $0x48] sm:$0xff]
    %v27 = vld [vmem:[%s1 + $0x50] sm:$0xff]
    %v28 = vld [vmem:[%s1 + $0x58] sm:$0xff]
    %v29 = vld [vmem:[%s1 + $0x60] sm:$0xff]
    %v30 = vld [vmem:[%s1 + $0x68] sm:$0xff]
    %v31 = vld [vmem:[%s1 + $0x70] sm:$0xff]
    %v32 = vld [vmem:[%s1 + $0x78] sm:$0xff]
    %v33 = vld [vmem:[%s1 + $0x80] sm:$0xff]
    %v34 = vld [vmem:[%s1 + $0x88] sm:$0xff]
    %v35 = vld [vmem:[%s1 + $0x90] sm:$0xff]
    %v36 = vld [vmem:[%s1 + $0x98] sm:$0xff]
    %v37 = vld [vmem:[%s1 + $0xa0] sm:$0xff]
    %v38 = vld [vmem:[%s1 + $0xa8] sm:$0xff]
    %v39 = vld [vmem:[%s1 + $0xb0] sm:$0xff]
    %v40 = vld [vmem:[%s1 + $0xb8] sm:$0xff]
    %v41 = vld [vmem:[%s1 + $0xc0] sm:$0xff]
    %v42 = vld [vmem:[%s1 + $0xc8] sm:$0xff]
    %v43 = vld [vmem:[%s1 + $0xd0] sm:$0xff]
    %v44 = vld [vmem:[%s1 + $0xd8] sm:$0xff]
    %v45 = vld [vmem:[%s1 + $0xe0] sm:$0xff]
    %v46 = vld [vmem:[%s1 + $0xe8] sm:$0xff]
    %v47 = vld [vmem:[%s1 + $0xf0] sm:$0xff]
    %v48 = vld [vmem:[%s1 + $0xf8] sm:$0xff]
    %v49 = vld [vmem:[%s2] sm:$0x1]
    %v51 = vlaneseq
    %v52 = vshrl.u32 %v51, 7
    %v53 = vsub.s32 0, %v52
    %v54 = vrot.slane %v49, %v53
    %56 = vmatprep.subr.mxu0 0.0
    %57 = vmatpush1.msra.mxu0 %v17
    %58 = vmatprep.subr.mxu0 0.0
    %59 = vmatpush1.msra.mxu0 %v18
    %60 = vmatprep.subr.mxu0 0.0
    %61 = vmatpush1.msra.mxu0 %v19
    %62 = vmatprep.subr.mxu0 0.0
    %63 = vmatpush1.msra.mxu0 %v20
    %64 = vmatprep.subr.mxu0 0.0
    %65 = vmatpush1.msra.mxu0 %v21
    %66 = vmatprep.subr.mxu0 0.0
    %67 = vmatpush1.msra.mxu0 %v22
    %68 = vmatprep.subr.mxu0 0.0
    %69 = vmatpush1.msra.mxu0 %v23
    %70 = vmatprep.subr.mxu0 0.0
    %71 = vmatpush1.msra.mxu0 %v24
    %72 = vmatprep.subr.mxu0 0.0
    %73 = vmatpush1.msra.mxu0 %v25
    %74 = vmatprep.subr.mxu0 0.0
    %75 = vmatpush1.msra.mxu0 %v26
    %76 = vmatprep.subr.mxu0 0.0
    %77 = vmatpush1.msra.mxu0 %v27
    %78 = vmatprep.subr.mxu0 0.0
    %79 = vmatpush1.msra.mxu0 %v28
    %80 = vmatprep.subr.mxu0 0.0
    %81 = vmatpush1.msra.mxu0 %v29
    %82 = vmatprep.subr.mxu0 0.0
    %83 = vmatpush1.msra.mxu0 %v30
    %84 = vmatprep.subr.mxu0 0.0
    %85 = vmatpush1.msra.mxu0 %v31
    %86 = vmatprep.subr.mxu0 0.0
    %87 = vmatpush1.msra.mxu0 %v32
    %88 = vmatprep.subr.mxu0 0.0
    %89 = vmatpush1.msra.mxu0 %v33
    %90 = vmatprep.subr.mxu0 0.0
    %91 = vmatpush1.msra.mxu0 %v34
    %92 = vmatprep.subr.mxu0 0.0
    %93 = vmatpush1.msra.mxu0 %v35
    %94 = vmatprep.subr.mxu0 0.0
    %95 = vmatpush1.msra.mxu0 %v36
    %96 = vmatprep.subr.mxu0 0.0
    %97 = vmatpush1.msra.mxu0 %v37
    %98 = vmatprep.subr.mxu0 0.0
    %99 = vmatpush1.msra.mxu0 %v38
    %100 = vmatprep.subr.mxu0 0.0
    %101 = vmatpush1.msra.mxu0 %v39
    %102 = vmatprep.subr.mxu0 0.0
    %103 = vmatpush1.msra.mxu0 %v40
    %104 = vmatprep.subr.mxu0 0.0
    %105 = vmatpush1.msra.mxu0 %v41
    %106 = vmatprep.subr.mxu0 0.0
    %107 = vmatpush1.msra.mxu0 %v42
    %108 = vmatprep.subr.mxu0 0.0
    %109 = vmatpush1.msra.mxu0 %v43
    %110 = vmatprep.subr.mxu0 0.0
    %111 = vmatpush1.msra.mxu0 %v44
    %112 = vmatprep.subr.mxu0 0.0
    %113 = vmatpush1.msra.mxu0 %v45
    %114 = vmatprep.subr.mxu0 0.0
    %115 = vmatpush1.msra.mxu0 %v46
    %116 = vmatprep.subr.mxu0 0.0
    %117 = vmatpush1.msra.mxu0 %v47
    %118 = vmatprep.subr.mxu0 0.0
    %119 = vmatpush1.msra.mxu0 %v48
    %120 = vmatprep.mubr.f32.mxu0 %v16
    %121 = vmatmul.mubr.f32.gmra.mrb[0].mxu0 %v15
    %v122 = vpop.f32.mrb[0].mxu0
    %v123 = vadd.f32 %v54, %v122
    %v124 = vpop.f32.mrb[0].mxu0
    %125 = vdwg.mxu0
    %vm126 = vcmask 80896
    %127 = vst.msk [vmem:[#allocation2] sm:$0xff] %vm126, %v123
    // Predicated region
    $region14: #{_linear_fwd.1} parent=1 // pred_check
      _
    $region15: #{_linear_fwd.1} parent=1 // pred_check_branch
      %129 = sbr.rel (0) target = $region17
    $region16: #{_linear_fwd.1} parent=1 // pred_region
      %s131 = ssub.s32 128, 128
      %132 = vsyncadd [#allocation3], %s131
      %s134 = sshll.u32 [#allocation2], 4
      %s135 = int_to_ptr.vmem [resolvable:$true] %s134
      %137 = dma.vmem_to_hbm [thread:$0]  %s135, 128, %s3, [#allocation3]
    $region17: #{_linear_fwd.1} parent=1 // pred_fallthru
      _
    // Predicated region
    $region18: #{_linear_fwd.1} parent=1 // pred_check
      _
    $region19: #{_linear_fwd.1} parent=1 // pred_check_branch
      %139 = sbr.rel (0) target = $region21
    $region20: #{_linear_fwd.1} parent=1 // pred_region
      %140 = dma.done [#allocation3], 128
    $region21: #{_linear_fwd.1} parent=1 // pred_fallthru
      _
    %141 = vsyncpa [#allocation3], 1

</llo_original>
